<compile_context>
chip_gen: v7x
topology: tpu7x:2x2x1
jax: 0.10.0
libtpu: 0.0.40
codegen_flags: <defaults>
</compile_context>

<pallas_src>
import functools
import math

import jax
import jax.numpy as jnp
import numpy as np
from jax.experimental import pallas as pl
from jax.experimental.pallas import tpu as pltpu


def _cdc_kernel(x_ref, w_ref, o_ref, *, B_blk, W, M, matmul_dtype):
    # x_ref: (B_blk, C_in, (H+2)*(W+2))  zero-padded NCHW image, spatially flat
    # w_ref: (C_out, 5*C_in)             taps stacked along K, theta pre-folded
    # o_ref: (B_blk, C_out, M)           M = H*(W+2): H rows at padded width
    Wp = W + 2
    # flat offsets of the 5 taps: up, left, center, right, down
    offs = (0, W + 1, W + 2, W + 3, 2 * Wp)
    wts = w_ref[...].astype(matmul_dtype)                # (C_out, 5*C_in)
    x = x_ref[...]                                       # (B_blk, C_in, Lp)
    # Stack the 5 shifted views along the contraction axis for the whole batch
    # block at once.  Each view is a contiguous lane slice of the flat padded
    # plane (lane rotate on the XLU); one copy into the stacked operand, no
    # 2-D reshape shuffles.
    xs = jnp.concatenate([x[:, :, o:o + M] for o in offs], axis=1)
    xs = xs.astype(matmul_dtype)                         # (B_blk, 5*C_in, M)
    for b in range(B_blk):                               # static unroll (small)
        # Single MXU matmul per image; result (C_out, M) is lane-dense and
        # already in NCHW order, so the store is contiguous.
        out = jnp.dot(wts, xs[b], preferred_element_type=jnp.float32)
        o_ref[b] = out.astype(o_ref.dtype)


def _pick_batch_block(n, bytes_per_item, budget_bytes=4 << 20, max_unroll=32):
    """Largest divisor of n whose block stays under a modest VMEM budget,
    with a bounded unroll and >=2 grid steps (megacore) when possible."""
    cap = budget_bytes // max(1, bytes_per_item)
    cap = int(max(1, min(n, cap, max_unroll)))
    if n >= 2:
        cap = min(cap, max(1, n // 2))     # keep at least 2 grid steps
    b = cap
    while n % b:
        b -= 1
    return b


def conv2d_hori_veri_cross(x_nchw, weight, theta=0.7, matmul_dtype=jnp.float32):
    """x_nchw: (N, C_in, H, W) float32; weight: (C_out, C_in, 1, 5) float32."""
    N, C_in, H, W = x_nchw.shape
    C_out = weight.shape[0]
    Hp, Wp = H + 2, W + 2
    Lp = Hp * Wp            # flat length of one zero-padded image plane
    M = H * Wp              # flat length of the computed output rows

    if math.fabs(theta - 0.0) < 1e-8:
        theta = 0.0

    # --- weight repacking: fold -theta*sum(taps) into the center tap --------
    # w_taps: (C_out, 5, C_in), tap order [up(w0), left(w1), center(w2),
    # right(w3), down(w4)] matching the flat offsets used in the kernel.
    w_taps = jnp.transpose(weight[:, :, 0, :].astype(jnp.float32), (0, 2, 1))
    w_taps = w_taps.at[:, 2, :].add(-float(theta) * jnp.sum(w_taps, axis=1))
    w_stacked = w_taps.reshape(C_out, 5 * C_in)          # (C_out, 5*C_in)

    # --- input: zero-pad the 1-pixel halo, flatten spatially (free reshape) --
    x_pad = jnp.pad(x_nchw.astype(jnp.float32),
                    ((0, 0), (0, 0), (1, 1), (1, 1)))    # (N, C_in, H+2, W+2)
    x_flat = x_pad.reshape(N, C_in, Lp)

    bytes_per_item = 4 * (C_in * Lp + C_out * M)
    B_blk = _pick_batch_block(N, bytes_per_item)
    grid = (N // B_blk,)
    vmem_limit = int(min(64 << 20, max(32 << 20, 12 * B_blk * bytes_per_item)))

    kernel = functools.partial(_cdc_kernel, B_blk=B_blk, W=W, M=M,
                               matmul_dtype=matmul_dtype)

    cost = pl.CostEstimate(
        flops=2 * N * C_out * 5 * C_in * M,
        transcendentals=0,
        bytes_accessed=4 * (N * C_in * Lp + C_out * 5 * C_in + N * C_out * M))

    out_flat = pl.pallas_call(
        kernel,
        out_shape=jax.ShapeDtypeStruct((N, C_out, M), jnp.float32),
        grid_spec=pltpu.PrefetchScalarGridSpec(
            num_scalar_prefetch=0,
            grid=grid,
            in_specs=[
                pl.BlockSpec((B_blk, C_in, Lp), lambda n: (n, 0, 0)),
                pl.BlockSpec((C_out, 5 * C_in), lambda n: (0, 0)),
            ],
            out_specs=pl.BlockSpec((B_blk, C_out, M), lambda n: (n, 0, 0)),
        ),
        compiler_params=pltpu.CompilerParams(
            dimension_semantics=("parallel",),
            vmem_limit_bytes=vmem_limit),
        cost_estimate=cost,
    )(x_flat, w_stacked)

    # (N, C_out, M) -> (N, C_out, H, W+2) is a free row-major reshape; drop the
    # two junk columns per row that were computed alongside the valid pixels.
    return out_flat.reshape(N, C_out, H, Wp)[:, :, :, 1:W + 1]


def _reference(x_nchw, weight, theta=0.7):
    """Pure-JAX reference mirroring the PyTorch forward exactly (NCHW)."""
    C_out, C_in, _, _ = weight.shape
    zeros = jnp.zeros((C_out, C_in, 1), jnp.float32)
    w = weight
    cw = jnp.concatenate(
        [zeros, w[:, :, :, 0], zeros,
         w[:, :, :, 1], w[:, :, :, 2], w[:, :, :, 3],
         zeros, w[:, :, :, 4], zeros], axis=2).reshape(C_out, C_in, 3, 3)
    out_normal = jax.lax.conv_general_dilated(
        x_nchw, cw, window_strides=(1, 1), padding=((1, 1), (1, 1)),
        dimension_numbers=("NCHW", "OIHW", "NCHW"))
    if math.fabs(theta - 0.0) < 1e-8:
        return out_normal
    kdiff = jnp.sum(weight, axis=(2, 3))[:, :, None, None]
    out_diff = jax.lax.conv_general_dilated(
        x_nchw, kdiff, window_strides=(1, 1), padding="VALID",
        dimension_numbers=("NCHW", "OIHW", "NCHW"))
    return out_normal - theta * out_diff


if __name__ == "__main__":
    key = jax.random.PRNGKey(0)
    k_x, k_w = jax.random.split(key)

    N, C_in, C_out, H, W = 2, 4, 8, 16, 16
    theta = 0.7

    x = jax.random.normal(k_x, (N, C_in, H, W), dtype=jnp.float32)
    # deterministic init for nn.Conv2d(in, out, kernel_size=(1,5), bias=False)
    weight = jax.random.normal(k_w, (C_out, C_in, 1, 5), dtype=jnp.float32) * 0.1

    out = conv2d_hori_veri_cross(x, weight, theta=theta)
    out = jax.block_until_ready(out)

    ref = jax.block_until_ready(_reference(x, weight, theta=theta))
    np.testing.assert_allclose(np.asarray(out), np.asarray(ref),
                               rtol=1e-5, atol=1e-5)
    print("KERNEL_OK")
</pallas_src>

<mosaic_0001>
module attributes {stable_mosaic.version = 11 : i64} {
  func.func @_cdc_kernel(%arg0: i32, %arg1: memref<1x4x324xf32, #tpu.memory_space<vmem>>, %arg2: memref<8x20xf32, #tpu.memory_space<vmem>>, %arg3: memref<1x8x288xf32, #tpu.memory_space<vmem>>) attributes {dimension_semantics = [#tpu.dimension_semantics<parallel>], iteration_bounds = array<i64: 2>, scalar_prefetch = 0 : i64, scratch_operands = 0 : i64, tpu.core_type = #tpu.core_type<tc>, window_params = [{transform_indices = @transform_0, window_bounds = array<i64: 1, 4, 324>}, {pipeline_mode = #tpu.pipeline_mode<synchronous>, transform_indices = @transform_1, window_bounds = array<i64: 8, 20>}, {transform_indices = @transform_2, window_bounds = array<i64: 1, 8, 288>}]} {
    %c0 = arith.constant 0 : index
    %c0_0 = arith.constant 0 : index
    %0 = vector.load %arg2[%c0, %c0_0] : memref<8x20xf32, #tpu.memory_space<vmem>>, vector<8x20xf32>
    %c0_1 = arith.constant 0 : index
    %c0_2 = arith.constant 0 : index
    %c0_3 = arith.constant 0 : index
    %1 = vector.load %arg1[%c0_1, %c0_2, %c0_3] : memref<1x4x324xf32, #tpu.memory_space<vmem>>, vector<1x4x324xf32>
    %2 = vector.extract_strided_slice %1 {offsets = [0, 0, 0], sizes = [1, 4, 288], strides = [1, 1, 1]} : vector<1x4x324xf32> to vector<1x4x288xf32>
    %3 = vector.extract_strided_slice %1 {offsets = [0, 0, 17], sizes = [1, 4, 288], strides = [1, 1, 1]} : vector<1x4x324xf32> to vector<1x4x288xf32>
    %4 = vector.extract_strided_slice %1 {offsets = [0, 0, 18], sizes = [1, 4, 288], strides = [1, 1, 1]} : vector<1x4x324xf32> to vector<1x4x288xf32>
    %5 = vector.extract_strided_slice %1 {offsets = [0, 0, 19], sizes = [1, 4, 288], strides = [1, 1, 1]} : vector<1x4x324xf32> to vector<1x4x288xf32>
    %6 = vector.extract_strided_slice %1 {offsets = [0, 0, 36], sizes = [1, 4, 288], strides = [1, 1, 1]} : vector<1x4x324xf32> to vector<1x4x288xf32>
    %7 = tpu.concatenate %2, %3, %4, %5, %6 in 1 : vector<1x4x288xf32>, vector<1x4x288xf32>, vector<1x4x288xf32>, vector<1x4x288xf32>, vector<1x4x288xf32> -> vector<1x20x288xf32>
    %8 = vector.shape_cast %7 : vector<1x20x288xf32> to vector<20x288xf32>
    %cst = arith.constant dense<0.000000e+00> : vector<8x288xf32>
    %9 = tpu.matmul %0, %8, %cst {dimension_numbers = #tpu.dot_dimension_numbers<[1], [0], [0], [1], [0, 0, 1, 1], [], []>} : vector<8x20xf32>, vector<20x288xf32>, vector<8x288xf32> -> vector<8x288xf32>
    %c0_4 = arith.constant 0 : index
    %c0_5 = arith.constant 0 : index
    %c0_6 = arith.constant 0 : index
    %10 = vector.load %arg3[%c0_4, %c0_5, %c0_6] : memref<1x8x288xf32, #tpu.memory_space<vmem>>, vector<1x8x288xf32>
    %11 = vector.shape_cast %10 : vector<1x8x288xf32> to vector<8x288xf32>
    %12 = vector.shape_cast %9 : vector<8x288xf32> to vector<1x8x288xf32>
    tpu.vector_store %arg3[%c0_4, %c0_5, %c0_6], %12 {strides = array<i32>} : memref<1x8x288xf32, #tpu.memory_space<vmem>>, vector<1x8x288xf32>,
    return
  }
  func.func @transform_0(%arg0: i32) -> (i32, i32, i32) {
    %c0_i32 = arith.constant 0 : i32
    %c0_i32_0 = arith.constant 0 : i32
    %c0_i32_1 = arith.constant 0 : i32
    return %arg0, %c0_i32, %c0_i32_0 : i32, i32, i32
  }
  func.func @transform_1(%arg0: i32) -> (i32, i32) {
    %c0_i32 = arith.constant 0 : i32
    %c0_i32_0 = arith.constant 0 : i32
    %c0_i32_1 = arith.constant 0 : i32
    return %c0_i32, %c0_i32_0 : i32, i32
  }
  func.func @transform_2(%arg0: i32) -> (i32, i32, i32) {
    %c0_i32 = arith.constant 0 : i32
    %c0_i32_0 = arith.constant 0 : i32
    %c0_i32_1 = arith.constant 0 : i32
    return %arg0, %c0_i32, %c0_i32_0 : i32, i32, i32
  }
}

</mosaic_0001>

<llo_original>
// kernel: tpu_custom_call.1
$region0: #{tpu_custom_call.1}
  #allocation0 [shape = 'u32[]', space=smem, size = 0x4, offset = 0x4, fixed_abs, tag = 'smem constant byte address 0x4 - core index']
  #allocation1 [shape = 'u32[144,128]{1,0:T(1,128)}', space=vmem, size = 0x12000, scoped, tag = 'internal scratch']
  %s0 = inlined_call_operand.hbm [shape: f32[2,4,324], index: 0, kind: input, shape index: {}]
  %s1 = inlined_call_operand.hbm [shape: f32[8,20], index: 1, kind: input, shape index: {}]
  %s2 = inlined_call_operand.hbm [shape: f32[2,8,288], index: 2, kind: output, shape index: {}]
  %s3 = sld [smem:[#allocation0]]
  $region49: #{tpu_custom_call.1} parent=0
    _
  %s5 = ssub.s32 1, %s3
  %s6 = scalar_select 0, %s5, %s3
  $region1: #{tpu_custom_call.1} parent=0
    #allocation2 [shape = 'u8[12288]{0}', space=vmem, size = 0x3000, scoped, tag = 'input window, operand 0']
    #allocation3 [shape = 's32[2]{0}', space=sflag, size = 0x8, scoped, tag = 'scoped memory for tpu_custom_call.1']
    #allocation4 [shape = 's32[2]{0}', space=sflag, size = 0x8, scoped, tag = 'scoped memory for tpu_custom_call.1']
    #allocation5 [shape = 'u8[4096]{0}', space=vmem, size = 0x1000, scoped, tag = 'input window, operand 1, single buffered']
    #allocation6 [shape = 's32[1]{0}', space=sflag, size = 0x4, scoped, tag = 'scoped memory for tpu_custom_call.1']
    #allocation7 [shape = 'u8[24576]{0}', space=vmem, size = 0x6000, scoped, tag = 'output window, operand 0']
    %7 = vsyncpa [#allocation3], 0
    %s8 = scalar_lea.sflag [#allocation3], 1
    %9 = vsyncpa %s8, 0
    %10 = vsyncpa [#allocation6], 0
    %11 = vsyncpa [#allocation4], 0
    %s12 = scalar_lea.sflag [#allocation4], 1
    %13 = vsyncpa %s12, 0
    loop: start=0, step=1, limit=4
    $region2: #{tpu_custom_call.1} parent=1 // loop_pre_header
      _
    $region3: #{tpu_custom_call.1} parent=1 // loop_header
      %s15 = sphi 0, %s19
      %p16 = scmp.ge.s32.totalorder %s15, 4
      %s25 = sphi 0, %s27
      %s28 = sphi 0, %s25
      %s29 = sphi 0, %s28
      %s45 = sphi 0, %s29
      %s49 = sphi 0, %s49
      %s51 = sphi 0, %s49
      %s52 = sphi 0, %s51
      %s66 = sphi 0, %s52
      %s72 = sphi 0, %s74
      %s75 = sphi 0, %s72
      %s76 = sphi 0, %s75
      %s92 = sphi 0, %s76
    $region4: #{tpu_custom_call.1} parent=1 // loop_header_branch
      %18 = sbr.rel (%p16) target = $region8
    $region5: #{tpu_custom_call.1} parent=1 // loop_body
      %s20 = ssub.s32 %s15, 1
      %s21 = ssub.s32 %s15, 2
      %s22 = sadd.s32 %s15, 1
      %s23 = ssub.s32 %s15, %s22
      %p24 = scmp.eq.s32.totalorder %s23, 0
      %s26 = sadd.s32 %s25, 1
      %s27 = scalar_select %p24, %s25, %s26
      %p30 = pneg %p24
      %p31 = scmp.eq.s32.totalorder %s15, 1
      %p32 = por %p30, %p31
      %p33 = scmp.ne.s32.totalorder %s25, %s28
      %p34 = scmp.eq.s32.totalorder %s15, 0
      %p35 = por %p33, %p34
      %p36 = scmp.ne.s32.totalorder %s25, %s28
      %p37 = scmp.eq.s32.totalorder %s20, 1
      %p38 = por %p36, %p37
      %p39 = scmp.ne.s32.totalorder %s28, %s29
      %p40 = scmp.eq.s32.totalorder %s20, 0
      %p41 = por %p39, %p40
      %p42 = scmp.ne.s32.totalorder %s28, %s29
      %p43 = scmp.eq.s32.totalorder %s21, 1
      %p44 = por %p42, %p43
      %p46 = scmp.ne.s32.totalorder %s29, %s45
      %p47 = scmp.eq.s32.totalorder %s21, 0
      %p48 = por %p46, %p47
      %s50 = sadd.s32 %s49, 1
      %p53 = scmp.eq.s32.totalorder %s15, 1
      %p54 = scmp.ne.s32.totalorder %s49, %s51
      %p55 = scmp.eq.s32.totalorder %s15, 0
      %p56 = por %p54, %p55
      %p57 = scmp.ne.s32.totalorder %s49, %s51
      %p58 = scmp.eq.s32.totalorder %s20, 1
      %p59 = por %p57, %p58
      %p60 = scmp.ne.s32.totalorder %s51, %s52
      %p61 = scmp.eq.s32.totalorder %s20, 0
      %p62 = por %p60, %p61
      %p63 = scmp.ne.s32.totalorder %s51, %s52
      %p64 = scmp.eq.s32.totalorder %s21, 1
      %p65 = por %p63, %p64
      %p67 = scmp.ne.s32.totalorder %s52, %s66
      %p68 = scmp.eq.s32.totalorder %s21, 0
      %p69 = por %p67, %p68
      %s70 = ssub.s32 %s15, %s22
      %p71 = scmp.eq.s32.totalorder %s70, 0
      %s73 = sadd.s32 %s72, 1
      %s74 = scalar_select %p71, %s72, %s73
      %p77 = pneg %p71
      %p78 = scmp.eq.s32.totalorder %s15, 1
      %p79 = por %p77, %p78
      %p80 = scmp.ne.s32.totalorder %s72, %s75
      %p81 = scmp.eq.s32.totalorder %s15, 0
      %p82 = por %p80, %p81
      %p83 = scmp.ne.s32.totalorder %s72, %s75
      %p84 = scmp.eq.s32.totalorder %s20, 1
      %p85 = por %p83, %p84
      %p86 = scmp.ne.s32.totalorder %s75, %s76
      %p87 = scmp.eq.s32.totalorder %s20, 0
      %p88 = por %p86, %p87
      %p89 = scmp.ne.s32.totalorder %s75, %s76
      %p90 = scmp.eq.s32.totalorder %s21, 1
      %p91 = por %p89, %p90
      %p93 = scmp.ne.s32.totalorder %s76, %s92
      %p94 = scmp.eq.s32.totalorder %s21, 0
      %p95 = por %p93, %p94
      %p96 = scmp.le.s32.totalorder 1, %s15
      %p97 = scmp.lt.s32.totalorder %s15, 3
      %p98 = pnand %p96, %p97
      %p99 = pneg %p98
      // Predicated region
      $region9: #{tpu_custom_call.1} parent=5 // pred_check
        _
      $region10: #{tpu_custom_call.1} parent=5 // pred_check_branch
        %101 = sbr.rel (%p98) target = $region12
      $region11: #{tpu_custom_call.1} parent=5 // pred_region
        %s102 = ssub.s32 %s15, 1
        // Predicated region
        $region13: #{tpu_custom_call.1} parent=11 // pred_check
          %p103 = pneg %p62
        $region14: #{tpu_custom_call.1} parent=11 // pred_check_branch
          %105 = sbr.rel (%p103) target = $region16
        $region15: #{tpu_custom_call.1} parent=11 // pred_region
          %s107 = ssub.s32 128, 128
          %108 = vsyncadd [#allocation6], %s107
          %s110 = sshll.u32 [#allocation5], 4
          %s111 = int_to_ptr.vmem [resolvable:$true] %s110
          %113 = dma.hbm_to_vmem [thread:$0]  %s1, 128, %s111, [#allocation6]
        $region16: #{tpu_custom_call.1} parent=11 // pred_fallthru
          _
      $region12: #{tpu_custom_call.1} parent=5 // pred_fallthru
        _
      %p114 = scmp.lt.s32.totalorder %s15, 2
      // Predicated region
      $region17: #{tpu_custom_call.1} parent=5 // pred_check
        %p115 = pneg %p114
      $region18: #{tpu_custom_call.1} parent=5 // pred_check_branch
        %117 = sbr.rel (%p115) target = $region20
      $region19: #{tpu_custom_call.1} parent=5 // pred_region
        // Predicated region
        $region21: #{tpu_custom_call.1} parent=19 // pred_check
          %p118 = pneg %p35
        $region22: #{tpu_custom_call.1} parent=19 // pred_check_branch
          %120 = sbr.rel (%p118) target = $region24
        $region23: #{tpu_custom_call.1} parent=19 // pred_region
          %s121 = sand.u32 %s25, 1
          %s122 = scalar_lea.sflag [#allocation3], %s121
          %s123 = sand.u32 %s25, 1
          %s124 = smul.addr %s123, 12
          %s125 = scalar_lea.vmem [#allocation2], %s124
          %s127 = ssub.s32 192, 192
          %128 = vsyncadd %s122, %s127
          %s129 = smul.addr %s15, 3
          %s130 = smul.addr %s129, 64
          %s131 = scalar_lea.hbm %s0, %s130
          %s133 = sshll.u32 %s125, 4
          %s134 = int_to_ptr.vmem [resolvable:$true] %s133
          %136 = dma.hbm_to_vmem [thread:$0]  %s131, 192, %s134, %s122
        $region24: #{tpu_custom_call.1} parent=19 // pred_fallthru
          _
      $region20: #{tpu_custom_call.1} parent=5 // pred_fallthru
        _
      %p137 = scmp.le.s32.totalorder 1, %s15
      %p138 = scmp.lt.s32.totalorder %s15, 3
      %p139 = pnand %p137, %p138
      %p140 = pneg %p139
      // Predicated region
      $region25: #{tpu_custom_call.1} parent=5 // pred_check
        _
      $region26: #{tpu_custom_call.1} parent=5 // pred_check_branch
        %142 = sbr.rel (%p139) target = $region28
      $region27: #{tpu_custom_call.1} parent=5 // pred_region
        %s143 = ssub.s32 %s15, 1
        %s144 = sand.u32 %s28, 1
        %s145 = scalar_lea.sflag [#allocation3], %s144
        %s146 = sand.u32 %s28, 1
        %s147 = smul.addr %s146, 12
        %s148 = scalar_lea.vmem [#allocation2], %s147
        // Predicated region
        $region29: #{tpu_custom_call.1} parent=27 // pred_check
          %p149 = pneg %p41
        $region30: #{tpu_custom_call.1} parent=27 // pred_check_branch
          %151 = sbr.rel (%p149) target = $region32
        $region31: #{tpu_custom_call.1} parent=27 // pred_region
          %152 = dma.done %s145, 192
        $region32: #{tpu_custom_call.1} parent=27 // pred_fallthru
          _
        // Predicated region
        $region33: #{tpu_custom_call.1} parent=27 // pred_check
          %p153 = pneg %p62
        $region34: #{tpu_custom_call.1} parent=27 // pred_check_branch
          %155 = sbr.rel (%p153) target = $region36
        $region35: #{tpu_custom_call.1} parent=27 // pred_region
          %156 = dma.done [#allocation6], 128
        $region36: #{tpu_custom_call.1} parent=27 // pred_fallthru
          _
        %s157 = sand.u32 %s28, 1
        %s158 = scalar_lea.sflag [#allocation3], %s157
        %s159 = sand.u32 %s28, 1
        %s160 = smul.addr %s159, 12
        %s161 = scalar_lea.vmem [#allocation2], %s160
        %p162 = pneg %p41
        %p163 = pneg %p38
        %p164 = pneg %p62
        %p165 = pneg %p59
        %p166 = pneg %p88
        %p167 = pneg %p85
        %s168 = sand.u32 %s75, 1
        %s169 = scalar_lea.sflag [#allocation4], %s168
        %s170 = sand.u32 %s75, 1
        %s171 = smul.addr %s170, 24
        %s172 = scalar_lea.vmem [#allocation7], %s171
        %v173 = vld [vmem:[#allocation5] sm:$0xff]
        %v174 = vld [vmem:[%s148] sm:$0xff]
        %v175 = vld [vmem:[%s148 + $0x8] sm:$0xf]
        %v178 = vcombine.high %v174, %v174
        %v180 = vcombine.low %v174, %v174
        %v181 = vcombine.low %v175, %v175
        %182 = vrot.lane.b32.xlu0 %v180, 111
        %v183 = vpop.permute.xlu0 %182
        %184 = vrot.lane.b32.xlu0 %v174, 111
        %v185 = vpop.permute.xlu0 %184
        %186 = vrot.lane.b32.xlu0 %v181, 111
        %v187 = vpop.permute.xlu0 %186
        %vm188 = vcmask 908288
        %v189 = vsel %vm188, %v183, %v185
        %v190 = vsel %vm188, %v185, %v187
        %194 = vrot.lane.b32.xlu0 %v174, 110
        %v195 = vpop.permute.xlu0 %194
        %196 = vrot.lane.b32.xlu0 %v178, 110
        %v197 = vpop.permute.xlu0 %196
        %198 = vrot.lane.b32.xlu0 %v175, 110
        %v199 = vpop.permute.xlu0 %198
        %vm200 = vcmask 900096
        %v201 = vsel %vm200, %v195, %v197
        %v202 = vsel %vm200, %v197, %v199
        %206 = vrot.lane.b32.xlu0 %v180, 109
        %v207 = vpop.permute.xlu0 %206
        %208 = vrot.lane.b32.xlu0 %v174, 109
        %v209 = vpop.permute.xlu0 %208
        %210 = vrot.lane.b32.xlu0 %v181, 109
        %v211 = vpop.permute.xlu0 %210
        %vm212 = vcmask 891904
        %v213 = vsel %vm212, %v207, %v209
        %v214 = vsel %vm212, %v209, %v211
        %218 = vrot.lane.b32.xlu0 %v174, 92
        %v219 = vpop.permute.xlu0 %218
        %220 = vrot.lane.b32.xlu0 %v178, 92
        %v221 = vpop.permute.xlu0 %220
        %222 = vrot.lane.b32.xlu0 %v175, 92
        %v223 = vpop.permute.xlu0 %222
        %vm224 = vcmask 752640
        %v225 = vsel %vm224, %v219, %v221
        %v226 = vsel %vm224, %v221, %v223
        %vm227 = vcmask 1043456
        %v228 = vsel %vm227, %v174, %v189
        %v229 = vsel %vm227, %v178, %v190
        %v230 = vsel %vm227, %v175, %v187
        %v231 = vsel %vm227, %v201, %v213
        %v232 = vsel %vm227, %v202, %v214
        %v233 = vsel %vm227, %v199, %v211
        %vm234 = vcmask 162816
        %v236 = vsel %vm234, %v173, 0
        %v238 = vsel %vm227, %v225, 0
        %v240 = vsel %vm227, %v226, 0
        %v242 = vsel %vm227, %v223, 0
        %244 = vmatprep.subr.mxu0 %v229
        %245 = vmatpush1.msra.mxu0 %v228
        %246 = vmatprep.subr.mxu0 %v232
        %247 = vmatpush1.msra.mxu0 %v231
        %248 = vmatprep.subr.mxu0 %v240
        %249 = vmatpush1.msra.mxu0 %v238
        %250 = vmatprep.subr.mxu0 0.0
        %251 = vmatpush1.msra.mxu0 0.0
        %252 = vmatprep.subr.mxu0 0.0
        %253 = vmatpush1.msra.mxu0 0.0
        %254 = vmatprep.subr.mxu0 0.0
        %255 = vmatpush1.msra.mxu0 0.0
        %256 = vmatprep.subr.mxu0 0.0
        %257 = vmatpush1.msra.mxu0 0.0
        %258 = vmatprep.subr.mxu0 0.0
        %259 = vmatpush1.msra.mxu0 0.0
        %260 = vmatprep.subr.mxu0 0.0
        %261 = vmatpush1.msra.mxu0 0.0
        %262 = vmatprep.subr.mxu0 0.0
        %263 = vmatpush1.msra.mxu0 0.0
        %264 = vmatprep.subr.mxu0 0.0
        %265 = vmatpush1.msra.mxu0 0.0
        %266 = vmatprep.subr.mxu0 0.0
        %267 = vmatpush1.msra.mxu0 0.0
        %268 = vmatprep.subr.mxu0 0.0
        %269 = vmatpush1.msra.mxu0 0.0
        %270 = vmatprep.subr.mxu0 0.0
        %271 = vmatpush1.msra.mxu0 0.0
        %272 = vmatprep.subr.mxu0 0.0
        %273 = vmatpush1.msra.mxu0 0.0
        %274 = vmatprep.subr.mxu0 0.0
        %275 = vmatpush1.msra.mxu0 0.0
        %276 = vmatprep.subr.mxu0 0.0
        %277 = vmatpush1.msra.mxu0 0.0
        %278 = vmatprep.subr.mxu0 0.0
        %279 = vmatpush1.msra.mxu0 0.0
        %280 = vmatprep.subr.mxu0 0.0
        %281 = vmatpush1.msra.mxu0 0.0
        %282 = vmatprep.subr.mxu0 0.0
        %283 = vmatpush1.msra.mxu0 0.0
        %284 = vmatprep.subr.mxu0 0.0
        %285 = vmatpush1.msra.mxu0 0.0
        %286 = vmatprep.subr.mxu0 0.0
        %287 = vmatpush1.msra.mxu0 0.0
        %288 = vmatprep.subr.mxu0 0.0
        %289 = vmatpush1.msra.mxu0 0.0
        %290 = vmatprep.subr.mxu0 0.0
        %291 = vmatpush1.msra.mxu0 0.0
        %292 = vmatprep.subr.mxu0 0.0
        %293 = vmatpush1.msra.mxu0 0.0
        %294 = vmatprep.subr.mxu0 0.0
        %295 = vmatpush1.msra.mxu0 0.0
        %296 = vmatprep.subr.mxu0 0.0
        %297 = vmatpush1.msra.mxu0 0.0
        %298 = vmatprep.subr.mxu0 0.0
        %299 = vmatpush1.msra.mxu0 0.0
        %300 = vmatprep.subr.mxu0 0.0
        %301 = vmatpush1.msra.mxu0 0.0
        %302 = vmatprep.subr.mxu0 0.0
        %303 = vmatpush1.msra.mxu0 0.0
        %304 = vmatprep.subr.mxu0 0.0
        %305 = vmatpush1.msra.mxu0 0.0
        %306 = vmatprep.subr.mxu0 0.0
        %307 = vmatpush1.msra.mxu0 0.0
        %308 = vmatprep.mubr.f32.mxu0 0.0
        %309 = vmatmul.mubr.f32.gmra.mrb[0].mxu0 %v236
        %v310 = vpop.f32.mrb[0].mxu0
        %v311 = vadd.f32 0.0, %v310
        %v312 = vpop.f32.mrb[0].mxu0
        %v313 = vadd.f32 0.0, %v312
        %314 = vdwg.mxu0
        %315 = vmatprep.subr.mxu0 0.0
        %316 = vmatpush1.msra.mxu0 %v230
        %317 = vmatprep.subr.mxu0 0.0
        %318 = vmatpush1.msra.mxu0 %v233
        %319 = vmatprep.subr.mxu0 0.0
        %320 = vmatpush1.msra.mxu0 %v242
        %321 = vmatprep.subr.mxu0 0.0
        %322 = vmatpush1.msra.mxu0 0.0
        %323 = vmatprep.subr.mxu0 0.0
        %324 = vmatpush1.msra.mxu0 0.0
        %325 = vmatprep.subr.mxu0 0.0
        %326 = vmatpush1.msra.mxu0 0.0
        %327 = vmatprep.subr.mxu0 0.0
        %328 = vmatpush1.msra.mxu0 0.0
        %329 = vmatprep.subr.mxu0 0.0
        %330 = vmatpush1.msra.mxu0 0.0
        %331 = vmatprep.subr.mxu0 0.0
        %332 = vmatpush1.msra.mxu0 0.0
        %333 = vmatprep.subr.mxu0 0.0
        %334 = vmatpush1.msra.mxu0 0.0
        %335 = vmatprep.subr.mxu0 0.0
        %336 = vmatpush1.msra.mxu0 0.0
        %337 = vmatprep.subr.mxu0 0.0
        %338 = vmatpush1.msra.mxu0 0.0
        %339 = vmatprep.subr.mxu0 0.0
        %340 = vmatpush1.msra.mxu0 0.0
        %341 = vmatprep.subr.mxu0 0.0
        %342 = vmatpush1.msra.mxu0 0.0
        %343 = vmatprep.subr.mxu0 0.0
        %344 = vmatpush1.msra.mxu0 0.0
        %345 = vmatprep.subr.mxu0 0.0
        %346 = vmatpush1.msra.mxu0 0.0
        %347 = vmatprep.subr.mxu0 0.0
        %348 = vmatpush1.msra.mxu0 0.0
        %349 = vmatprep.subr.mxu0 0.0
        %350 = vmatpush1.msra.mxu0 0.0
        %351 = vmatprep.subr.mxu0 0.0
        %352 = vmatpush1.msra.mxu0 0.0
        %353 = vmatprep.subr.mxu0 0.0
        %354 = vmatpush1.msra.mxu0 0.0
        %355 = vmatprep.subr.mxu0 0.0
        %356 = vmatpush1.msra.mxu0 0.0
        %357 = vmatprep.subr.mxu0 0.0
        %358 = vmatpush1.msra.mxu0 0.0
        %359 = vmatprep.subr.mxu0 0.0
        %360 = vmatpush1.msra.mxu0 0.0
        %361 = vmatprep.subr.mxu0 0.0
        %362 = vmatpush1.msra.mxu0 0.0
        %363 = vmatprep.subr.mxu0 0.0
        %364 = vmatpush1.msra.mxu0 0.0
        %365 = vmatprep.subr.mxu0 0.0
        %366 = vmatpush1.msra.mxu0 0.0
        %367 = vmatprep.subr.mxu0 0.0
        %368 = vmatpush1.msra.mxu0 0.0
        %369 = vmatprep.subr.mxu0 0.0
        %370 = vmatpush1.msra.mxu0 0.0
        %371 = vmatprep.subr.mxu0 0.0
        %372 = vmatpush1.msra.mxu0 0.0
        %373 = vmatprep.subr.mxu0 0.0
        %374 = vmatpush1.msra.mxu0 0.0
        %375 = vmatprep.subr.mxu0 0.0
        %376 = vmatpush1.msra.mxu0 0.0
        %377 = vmatprep.subr.mxu0 0.0
        %378 = vmatpush1.msra.mxu0 0.0
        %379 = vmatprep.mubr.f32.mxu0 0.0
        %380 = vmatmul.mubr.f32.gmra.mrb[0].mxu0 %v236
        %v381 = vpop.f32.mrb[0].mxu0
        %v382 = vadd.f32 0.0, %v381
        %v383 = vpop.f32.mrb[0].mxu0
        %384 = vdwg.mxu0
        %385 = vst [vmem:[%s172] sm:$0xff] %v311
        %386 = vst [vmem:[%s172 + $0x8] sm:$0xff] %v313
        %vm387 = vcmask 261120
        %388 = vst.msk [vmem:[%s172 + $0x10] sm:$0xff] %vm387, %v382
        %s389 = sand.u32 %s75, 1
        %s390 = scalar_lea.sflag [#allocation4], %s389
        %s391 = sand.u32 %s75, 1
        %s392 = smul.addr %s391, 24
        %s393 = scalar_lea.vmem [#allocation7], %s392
        // Predicated region
        $region37: #{tpu_custom_call.1} parent=27 // pred_check
          %p394 = pneg %p85
        $region38: #{tpu_custom_call.1} parent=27 // pred_check_branch
          %396 = sbr.rel (%p394) target = $region40
        $region39: #{tpu_custom_call.1} parent=27 // pred_region
          %s398 = ssub.s32 384, 384
          %399 = vsyncadd %s390, %s398
          %s400 = smul.addr %s20, 3
          %s401 = smul.addr %s400, 128
          %s402 = scalar_lea.hbm %s2, %s401
          %s404 = sshll.u32 %s393, 4
          %s405 = int_to_ptr.vmem [resolvable:$true] %s404
          %407 = dma.vmem_to_hbm [thread:$0]  %s405, 384, %s402, %s390
        $region40: #{tpu_custom_call.1} parent=27 // pred_fallthru
          _
      $region28: #{tpu_custom_call.1} parent=5 // pred_fallthru
        _
      %p408 = scmp.le.s32.totalorder 2, %s15
      // Predicated region
      $region41: #{tpu_custom_call.1} parent=5 // pred_check
        %p409 = pneg %p408
      $region42: #{tpu_custom_call.1} parent=5 // pred_check_branch
        %411 = sbr.rel (%p409) target = $region44
      $region43: #{tpu_custom_call.1} parent=5 // pred_region
        %s412 = ssub.s32 %s15, 2
        // Predicated region
        $region45: #{tpu_custom_call.1} parent=43 // pred_check
          %p413 = pneg %p91
        $region46: #{tpu_custom_call.1} parent=43 // pred_check_branch
          %415 = sbr.rel (%p413) target = $region48
        $region47: #{tpu_custom_call.1} parent=43 // pred_region
          %s416 = sand.u32 %s76, 1
          %s417 = scalar_lea.sflag [#allocation4], %s416
          %s418 = sand.u32 %s76, 1
          %s419 = smul.addr %s418, 24
          %s420 = scalar_lea.vmem [#allocation7], %s419
          %421 = dma.done %s417, 384
        $region48: #{tpu_custom_call.1} parent=43 // pred_fallthru
          _
      $region44: #{tpu_custom_call.1} parent=5 // pred_fallthru
        _
    $region6: #{tpu_custom_call.1} parent=1 // loop_footer
      %s19 = sadd.s32 1, %s15
    $region7: #{tpu_custom_call.1} parent=1 // loop_footer_branch
      %14 = sbr.rel target = $region3
    $region8: #{tpu_custom_call.1} parent=1 // loop_exit
      _
    %422 = vsyncpa [#allocation3], 1
    %s423 = scalar_lea.sflag [#allocation3], 1
    %424 = vsyncpa %s423, 1
    %425 = vsyncpa [#allocation6], 1
    %426 = vsyncpa [#allocation4], 1
    %s427 = scalar_lea.sflag [#allocation4], 1
    %428 = vsyncpa %s427, 1

</llo_original>
